<compile_context>
chip_gen: v7x
topology: tpu7x:2x2x1
jax: 0.10.0
libtpu: 0.0.40
codegen_flags: <defaults>
</compile_context>

<pallas_src>
import numpy as np
import jax
import jax.numpy as jnp
from jax.experimental import pallas as pl
from jax.experimental.pallas import tpu as pltpu


# ----------------------------- glue / constants -----------------------------

def _round_up(x: int, m: int) -> int:
    return ((x + m - 1) // m) * m


def _hamming_sym(m: int) -> np.ndarray:
    """scipy.signal.hamming(m, sym=True) equivalent."""
    n = np.arange(m)
    return 0.54 - 0.46 * np.cos(2.0 * np.pi * n / (m - 1))


def _build_dft_mats(n_fft: int, win_length: int):
    """Fold window + zero-phase rotation + rDFT into cos/sin matrices."""
    win = _hamming_sym(win_length)
    if win.sum() != 0.0:
        win = win / np.sqrt(n_fft)
    w = win_length
    hw_2 = w // 2                      # hw_1 = (w + 1) // 2 = w - hw_2
    half_n = n_fft // 2 + 1
    k = np.arange(w)
    # fft_buffer[: hw_1] = win_x[hw_2 :] -> sample k >= hw_2 lands at n = k - hw_2
    # fft_buffer[-hw_2:] = win_x[: hw_2] -> sample k <  hw_2 lands at n = n_fft - hw_2 + k
    buf_idx = np.where(k < hw_2, n_fft - hw_2 + k, k - hw_2)
    f = np.arange(half_n)
    ang = 2.0 * np.pi * np.outer(buf_idx, f) / n_fft          # (W, half_n)
    cos_m = (win[:, None] * np.cos(ang)).astype(np.float32)
    sin_m = (win[:, None] * np.sin(ang)).astype(np.float32)
    return cos_m, sin_m, half_n


_CS_CACHE = {}


def _get_cs_const(n_fft: int, win_length: int):
    """Memoized (2, W, f_pad) bf16 [cos ; sin] device constant."""
    key = (n_fft, win_length)
    if key not in _CS_CACHE:
        cos_m, sin_m, half_n = _build_dft_mats(n_fft, win_length)
        f_pad = _round_up(half_n, 128)
        cs_np = np.zeros((2, win_length, f_pad), np.float32)
        cs_np[0, :, :half_n] = cos_m
        cs_np[1, :, :half_n] = sin_m
        # TODO(synk): offer an f32 constant/matmul path for accuracy-sensitive
        # users; bf16 inputs give ~1e-3 relative magnitude error.
        _CS_CACHE[key] = (jnp.asarray(cs_np).astype(jnp.bfloat16), half_n, f_pad)
    return _CS_CACHE[key]


def _num_tensorcores() -> int:
    """Heuristic TensorCore count of the local chip: 1 on v5e/v6e, 2 on
    v4/v5p/v7x.  Defaults to 1 (one fat row tile) on anything unknown."""
    try:
        kind = jax.devices()[0].device_kind.lower()
    except Exception:
        return 1
    if "v5e" in kind or "v5 lite" in kind or "v5lite" in kind or "v6" in kind:
        return 1
    if "v4" in kind or "v5p" in kind or "v7" in kind or "7x" in kind:
        return 2
    return 1


# --------------------------------- kernel -----------------------------------

# atan polynomial on [0, 1] (Abramowitz & Stegun 4.4.49, |error| <= 1e-5).
_ATAN_C1 = 0.9998660
_ATAN_C3 = -0.3302995
_ATAN_C5 = 0.1801410
_ATAN_C7 = -0.0851330
_ATAN_C9 = 0.0208351
_PI = float(np.pi)
_HALF_PI = float(np.pi / 2.0)
_TINY = 1e-30     # guards the approx reciprocal against 1/0 and 1/subnormal


def _atan2_fast(im, re):
    """atan2(im, re): short VALU polynomial + EUP approximate reciprocal.
    The clamped ratio makes atan2(0, 0) -> 0 fall out for free (a == 0), so no
    extra zero-guard select is needed.
    # TODO(synk): optionally run this epilogue in bf16 on v6e/v7x (bf16 VPU,
    # 2 elems/lane) — it is the binding VLIW slot for small/medium W."""
    abs_re = jnp.abs(re)
    abs_im = jnp.abs(im)
    mx = jnp.maximum(abs_re, abs_im)
    mn = jnp.minimum(abs_re, abs_im)
    a = mn * pl.reciprocal(jnp.maximum(mx, _TINY), approx=True)  # ratio in [0,1]
    a2 = a * a
    p = a * (_ATAN_C1 + a2 * (_ATAN_C3 + a2 * (_ATAN_C5
             + a2 * (_ATAN_C7 + a2 * _ATAN_C9))))
    p = jnp.where(abs_im > abs_re, _HALF_PI - p, p)   # octant reduction
    p = jnp.where(re < 0.0, _PI - p, p)               # left half-plane
    return jnp.where(im < 0.0, -p, p)                 # lower half-plane


def _stft_kernel(frames_ref, cs_ref, mag_ref, ph_ref):
    f = frames_ref[...]                                      # (TR, W) bf16
    # Two MXU matmuls against the cos / sin halves of this frequency tile
    # (f32 accumulation).  Padded frequency columns compute harmless zeros.
    re = jnp.dot(f, cs_ref[0], preferred_element_type=jnp.float32)
    im = -jnp.dot(f, cs_ref[1], preferred_element_type=jnp.float32)
    mag_ref[...] = jnp.sqrt(re * re + im * im)               # magnitude (f32)
    ph_ref[...] = _atan2_fast(im, re).astype(ph_ref.dtype)   # phase (bf16)


def _const_block_spec(block_shape, index_map, *, single_buffer):
    """BlockSpec for the DFT constant.  When its block index never changes we
    request a single pipeline buffer (halves its VMEM footprint); fall back
    silently if this jax version has no pipeline_mode/Buffered."""
    if single_buffer:
        try:
            return pl.BlockSpec(block_shape, index_map,
                                pipeline_mode=pl.Buffered(1))
        except Exception:
            pass
    return pl.BlockSpec(block_shape, index_map)


# -------------------------------- wrapper -----------------------------------

def stft_forward(x, n_fft: int, hop_length: int, win_length: int,
                 tile_rows: int = 256):
    """Pallas STFT. Returns (magnitude, phase), each (len//hop, n_fft//2+1) f32."""
    x = jnp.asarray(x, jnp.float32).reshape(-1)
    pad = jnp.zeros((3 * hop_length,), jnp.float32)
    xp = jnp.concatenate([pad, x, pad])
    total_len = int(xp.shape[0])

    n_rows = total_len // hop_length
    p_end = total_len - win_length
    num_frames = (p_end // hop_length) + 1 if p_end >= 0 else 0

    cs, half_n, f_pad = _get_cs_const(n_fft, win_length)

    # Frequency tiling: resident constant slice is O(W * tile_f), so large
    # n_fft still fits v7x's 64 MiB VMEM; re/im stay paired inside one block.
    if f_pad <= 512:
        tile_f = f_pad
    else:
        tile_f = next(c for c in (512, 448, 384, 320, 256, 192, 128)
                      if f_pad % c == 0)
    n_ft = f_pad // tile_f

    # Row tiling: big tiles amortize the ~0.35us per-grid-step overhead.
    # 1-TC chips (v5e/v6e): one fat tile.  2-TC chips (v4/v5p/v7x): an even
    # split of row tiles so both TensorCores get equal work.
    row_g = 16                                    # bf16 sublane-packing granule
    n_tc = _num_tensorcores()
    r16 = _round_up(max(n_rows, 1), row_g)
    tile_rows = max(row_g, _round_up(tile_rows, row_g))
    if n_tc > 1:
        n_rt_target = n_tc * max(1, -(-r16 // (n_tc * tile_rows)))
        tile_rows = max(row_g, _round_up(-(-r16 // n_rt_target), row_g))
    else:
        tile_rows = min(tile_rows, r16)
    r_pad = _round_up(r16, tile_rows)
    n_rt = r_pad // tile_rows

    # Frame extraction WITHOUT an XLA gather, in bf16 (halves this HBM stream):
    # when the window spans a whole number of hops,
    #   frames[t] = concat_j xp[(t+j)*hop : (t+j+1)*hop].
    # TODO(synk): move this im2col into the kernel (memory_space=pl.ANY +
    # make_async_copy of hop-rows, assemble the (TR, W) tile in VMEM) to remove
    # the XLA-side frame materialization round-trip — biggest win on v5e.
    xp16 = xp.astype(jnp.bfloat16)
    if win_length % hop_length == 0:
        n_sub = win_length // hop_length
        rows_needed = max(r_pad + n_sub - 1, -(-total_len // hop_length))
        need = rows_needed * hop_length
        xp16 = jnp.concatenate(
            [xp16, jnp.zeros((need - total_len,), jnp.bfloat16)])
        sig = xp16.reshape(rows_needed, hop_length)
        frames = jnp.concatenate([sig[j:j + r_pad] for j in range(n_sub)],
                                 axis=1)                          # (r_pad, W)
    else:
        # General-case fallback (rare): gather of overlapping windows.
        frames = jnp.zeros((r_pad, win_length), jnp.bfloat16)
        if num_frames > 0:
            starts = np.arange(num_frames) * hop_length
            idx = starts[:, None] + np.arange(win_length)[None, :]
            frames = frames.at[:num_frames].set(xp16[idx])

    # Rows >= num_frames are never written by the reference -> force to zero
    # (mag = 0, phase = 0, exactly like the zero-initialised reference).
    frames = jnp.where(jnp.arange(r_pad)[:, None] < num_frames, frames, 0
                       ).astype(jnp.bfloat16)

    # Explicit VMEM budget from the actual tiles (frames x2 bufs, constant
    # x1-or-2, mag/phase x2 each) + headroom for epilogue temporaries.
    cs_bufs = 1 if n_ft == 1 else 2
    vmem_est = (2 * tile_rows * win_length * 2            # frames, bf16
                + cs_bufs * 2 * win_length * tile_f * 2   # [cos;sin], bf16
                + 2 * tile_rows * tile_f * 4              # mag out, f32
                + 2 * tile_rows * tile_f * 2              # phase out, bf16
                + 8 * tile_rows * tile_f * 4)             # epilogue temps
    vmem_limit = min(int(vmem_est * 1.5) + (8 << 20), 56 << 20)

    grid = (n_rt, n_ft)
    mag_full, ph_full = pl.pallas_call(
        _stft_kernel,
        out_shape=(jax.ShapeDtypeStruct((r_pad, f_pad), jnp.float32),
                   jax.ShapeDtypeStruct((r_pad, f_pad), jnp.bfloat16)),
        grid=grid,
        in_specs=[
            pl.BlockSpec((tile_rows, win_length), lambda i, j: (i, 0)),
            _const_block_spec((2, win_length, tile_f), lambda i, j: (0, 0, j),
                              single_buffer=(n_ft == 1)),
        ],
        out_specs=[
            pl.BlockSpec((tile_rows, tile_f), lambda i, j: (i, j)),
            pl.BlockSpec((tile_rows, tile_f), lambda i, j: (i, j)),
        ],
        compiler_params=pltpu.CompilerParams(
            dimension_semantics=("parallel", "arbitrary"),
            vmem_limit_bytes=vmem_limit),
    )(frames, cs)

    mag = mag_full[:n_rows, :half_n]
    phase = ph_full[:n_rows, :half_n].astype(jnp.float32)
    return mag, phase


# ----------------------------- numpy reference -------------------------------

def _reference_stft(x, n_fft, hop, winlen):
    win = _hamming_sym(winlen)
    if win.sum() != 0.0:
        win = win / np.sqrt(n_fft)
    xpad = np.concatenate([np.zeros(3 * hop), np.asarray(x, np.float64),
                           np.zeros(3 * hop)])
    half_n = n_fft // 2 + 1
    hw_1 = (winlen + 1) // 2
    hw_2 = winlen // 2
    n_rows = len(xpad) // hop
    xm = np.zeros((n_rows, half_n), np.float32)
    xph = np.zeros((n_rows, half_n), np.float32)
    p_in, p_end, idx = 0, len(xpad) - winlen, 0
    while p_in <= p_end:
        seg = xpad[p_in:p_in + winlen] * win
        buf = np.zeros(n_fft)
        buf[:hw_1] = seg[hw_2:]
        buf[-hw_2:] = seg[:hw_2]
        spec = np.fft.fft(buf)
        xm[idx, :] = np.abs(spec[:half_n])
        xph[idx, :] = np.angle(spec[:half_n])
        p_in += hop
        idx += 1
    return xm, xph


# ---------------------------------- main -------------------------------------

if __name__ == "__main__":
    n_fft = 128
    hop_length = 32
    win_length = 128
    sig_len = 512

    key = jax.random.PRNGKey(0)
    x = jax.random.normal(key, (sig_len,), dtype=jnp.float32)

    mag, phase = stft_forward(x, n_fft, hop_length, win_length)
    mag = jax.block_until_ready(mag)
    phase = jax.block_until_ready(phase)

    # Sanity check vs. numpy reference of the original module's forward.
    ref_mag, ref_phase = _reference_stft(np.asarray(x), n_fft, hop_length,
                                         win_length)
    assert mag.shape == ref_mag.shape and phase.shape == ref_phase.shape
    assert mag.dtype == jnp.float32 and phase.dtype == jnp.float32
    assert np.all(np.isfinite(np.asarray(mag)))
    assert np.all(np.isfinite(np.asarray(phase)))
    # bf16 matmul inputs (f32 MXU accumulation): magnitude error ~1e-3 typical;
    # structural errors would be O(1), so 1e-2 still validates correctness.
    assert np.allclose(np.asarray(mag), ref_mag, atol=1e-2, rtol=1e-2)
    # Phase compared on well-conditioned bins, modulo 2*pi wrap (bf16 re/im
    # noise + polynomial atan2 + bf16 phase store stay well inside 0.1 rad).
    mask = ref_mag > 0.25
    if mask.any():
        dphi = np.angle(np.exp(1j * (np.asarray(phase, np.float64) - ref_phase)))
        assert np.max(np.abs(dphi[mask])) < 1e-1

    print("KERNEL_OK")
</pallas_src>

<mosaic_0001>
module attributes {stable_mosaic.version = 11 : i64} {
  func.func @_stft_kernel(%arg0: i32, %arg1: i32, %arg2: memref<32x128xbf16, #tpu.memory_space<vmem>>, %arg3: memref<2x128x128xbf16, #tpu.memory_space<vmem>>, %arg4: memref<32x128xf32, #tpu.memory_space<vmem>>, %arg5: memref<32x128xbf16, #tpu.memory_space<vmem>>) attributes {dimension_semantics = [#tpu.dimension_semantics<parallel>, #tpu.dimension_semantics<arbitrary>], iteration_bounds = array<i64: 1, 1>, scalar_prefetch = 0 : i64, scratch_operands = 0 : i64, tpu.core_type = #tpu.core_type<tc>, window_params = [{transform_indices = @transform_0, window_bounds = array<i64: 32, 128>}, {pipeline_mode = #tpu.pipeline_mode<synchronous>, transform_indices = @transform_1, window_bounds = array<i64: 2, 128, 128>}, {transform_indices = @transform_2, window_bounds = array<i64: 32, 128>}, {transform_indices = @transform_3, window_bounds = array<i64: 32, 128>}]} {
    %c0 = arith.constant 0 : index
    %c0_0 = arith.constant 0 : index
    %0 = vector.load %arg2[%c0, %c0_0] : memref<32x128xbf16, #tpu.memory_space<vmem>>, vector<32x128xbf16>
    %c0_1 = arith.constant 0 : index
    %c0_2 = arith.constant 0 : index
    %c0_3 = arith.constant 0 : index
    %1 = vector.load %arg3[%c0_1, %c0_2, %c0_3] : memref<2x128x128xbf16, #tpu.memory_space<vmem>>, vector<1x128x128xbf16>
    %2 = vector.shape_cast %1 : vector<1x128x128xbf16> to vector<128x128xbf16>
    %cst = arith.constant dense<0.000000e+00> : vector<32x128xf32>
    %3 = tpu.matmul %0, %2, %cst {dimension_numbers = #tpu.dot_dimension_numbers<[1], [0], [0], [1], [0, 0, 1, 1], [], []>} : vector<32x128xbf16>, vector<128x128xbf16>, vector<32x128xf32> -> vector<32x128xf32>
    %c1 = arith.constant 1 : index
    %c0_4 = arith.constant 0 : index
    %c0_5 = arith.constant 0 : index
    %4 = vector.load %arg3[%c1, %c0_4, %c0_5] : memref<2x128x128xbf16, #tpu.memory_space<vmem>>, vector<1x128x128xbf16>
    %5 = vector.shape_cast %4 : vector<1x128x128xbf16> to vector<128x128xbf16>
    %cst_6 = arith.constant dense<0.000000e+00> : vector<32x128xf32>
    %6 = tpu.matmul %0, %5, %cst_6 {dimension_numbers = #tpu.dot_dimension_numbers<[1], [0], [0], [1], [0, 0, 1, 1], [], []>} : vector<32x128xbf16>, vector<128x128xbf16>, vector<32x128xf32> -> vector<32x128xf32>
    %cst_7 = arith.constant 0.000000e+00 : f32
    %7 = vector.broadcast %cst_7 : f32 to vector<32x128xf32>
    %8 = arith.subf %7, %6 : vector<32x128xf32>
    %9 = arith.mulf %3, %3 : vector<32x128xf32>
    %10 = arith.mulf %8, %8 : vector<32x128xf32>
    %11 = arith.addf %9, %10 : vector<32x128xf32>
    %12 = math.sqrt %11 : vector<32x128xf32>
    %c0_8 = arith.constant 0 : index
    %c0_9 = arith.constant 0 : index
    %13 = vector.load %arg4[%c0_8, %c0_9] : memref<32x128xf32, #tpu.memory_space<vmem>>, vector<32x128xf32>
    tpu.vector_store %arg4[%c0_8, %c0_9], %12 {strides = array<i32>} : memref<32x128xf32, #tpu.memory_space<vmem>>, vector<32x128xf32>,
    %14 = math.absf %3 : vector<32x128xf32>
    %15 = math.absf %8 : vector<32x128xf32>
    %16 = arith.maximumf %14, %15 : vector<32x128xf32>
    %17 = arith.minimumf %14, %15 : vector<32x128xf32>
    %cst_10 = arith.constant 1.000000e-30 : f32
    %18 = vector.broadcast %cst_10 : f32 to vector<32x128xf32>
    %19 = arith.maximumf %16, %18 : vector<32x128xf32>
    %20 = tpu.reciprocal %19 {approx = true} : vector<32x128xf32> -> vector<32x128xf32>
    %21 = arith.mulf %17, %20 : vector<32x128xf32>
    %22 = arith.mulf %21, %21 : vector<32x128xf32>
    %cst_11 = arith.constant 2.083510e-02 : f32
    %23 = vector.broadcast %cst_11 : f32 to vector<32x128xf32>
    %24 = arith.mulf %22, %23 : vector<32x128xf32>
    %cst_12 = arith.constant -8.513300e-02 : f32
    %25 = vector.broadcast %cst_12 : f32 to vector<32x128xf32>
    %26 = arith.addf %25, %24 : vector<32x128xf32>
    %27 = arith.mulf %22, %26 : vector<32x128xf32>
    %cst_13 = arith.constant 1.801410e-01 : f32
    %28 = vector.broadcast %cst_13 : f32 to vector<32x128xf32>
    %29 = arith.addf %28, %27 : vector<32x128xf32>
    %30 = arith.mulf %22, %29 : vector<32x128xf32>
    %cst_14 = arith.constant -0.330299497 : f32
    %31 = vector.broadcast %cst_14 : f32 to vector<32x128xf32>
    %32 = arith.addf %31, %30 : vector<32x128xf32>
    %33 = arith.mulf %22, %32 : vector<32x128xf32>
    %cst_15 = arith.constant 9.998660e-01 : f32
    %34 = vector.broadcast %cst_15 : f32 to vector<32x128xf32>
    %35 = arith.addf %34, %33 : vector<32x128xf32>
    %36 = arith.mulf %21, %35 : vector<32x128xf32>
    %37 = arith.cmpf ogt, %15, %14 : vector<32x128xf32>
    %cst_16 = arith.constant 1.57079637 : f32
    %38 = vector.broadcast %cst_16 : f32 to vector<32x128xf32>
    %39 = arith.subf %38, %36 : vector<32x128xf32>
    %40 = arith.select %37, %39, %36 : vector<32x128xi1>, vector<32x128xf32>
    %cst_17 = arith.constant 0.000000e+00 : f32
    %41 = vector.broadcast %cst_17 : f32 to vector<32x128xf32>
    %42 = arith.cmpf olt, %3, %41 : vector<32x128xf32>
    %cst_18 = arith.constant 3.14159274 : f32
    %43 = vector.broadcast %cst_18 : f32 to vector<32x128xf32>
    %44 = arith.subf %43, %40 : vector<32x128xf32>
    %45 = arith.select %42, %44, %40 : vector<32x128xi1>, vector<32x128xf32>
    %cst_19 = arith.constant 0.000000e+00 : f32
    %46 = vector.broadcast %cst_19 : f32 to vector<32x128xf32>
    %47 = arith.cmpf olt, %8, %46 : vector<32x128xf32>
    %cst_20 = arith.constant 0.000000e+00 : f32
    %48 = vector.broadcast %cst_20 : f32 to vector<32x128xf32>
    %49 = arith.subf %48, %45 : vector<32x128xf32>
    %50 = arith.select %47, %49, %45 : vector<32x128xi1>, vector<32x128xf32>
    %51 = arith.truncf %50 : vector<32x128xf32> to vector<32x128xbf16>
    %c0_21 = arith.constant 0 : index
    %c0_22 = arith.constant 0 : index
    %52 = vector.load %arg5[%c0_21, %c0_22] : memref<32x128xbf16, #tpu.memory_space<vmem>>, vector<32x128xbf16>
    tpu.vector_store %arg5[%c0_21, %c0_22], %51 {strides = array<i32>} : memref<32x128xbf16, #tpu.memory_space<vmem>>, vector<32x128xbf16>,
    return
  }
  func.func @transform_0(%arg0: i32, %arg1: i32) -> (i32, i32) {
    %c0_i32 = arith.constant 0 : i32
    %c0_i32_0 = arith.constant 0 : i32
    return %arg0, %c0_i32 : i32, i32
  }
  func.func @transform_1(%arg0: i32, %arg1: i32) -> (i32, i32, i32) {
    %c0_i32 = arith.constant 0 : i32
    %c0_i32_0 = arith.constant 0 : i32
    %c0_i32_1 = arith.constant 0 : i32
    return %c0_i32, %c0_i32_0, %arg1 : i32, i32, i32
  }
  func.func @transform_2(%arg0: i32, %arg1: i32) -> (i32, i32) {
    %c0_i32 = arith.constant 0 : i32
    return %arg0, %arg1 : i32, i32
  }
  func.func @transform_3(%arg0: i32, %arg1: i32) -> (i32, i32) {
    %c0_i32 = arith.constant 0 : i32
    return %arg0, %arg1 : i32, i32
  }
}

</mosaic_0001>

<llo_original>
// kernel: tpu_custom_call.1
$region0: #{tpu_custom_call.1}
  #allocation0 [shape = 'u32[]', space=smem, size = 0x4, offset = 0x4, fixed_abs, tag = 'smem constant byte address 0x4 - core index']
  #allocation1 [shape = 'u32[144,128]{1,0:T(1,128)}', space=vmem, size = 0x12000, scoped, tag = 'internal scratch']
  %s0 = inlined_call_operand.hbm [shape: bf16[32,128], index: 0, kind: input, shape index: {}]
  %s1 = inlined_call_operand.hbm [shape: bf16[2,128,128], index: 1, kind: input, shape index: {}]
  %s2 = inlined_call_operand.hbm [shape: f32[32,128], index: 2, kind: output, shape index: {0}]
  %s3 = inlined_call_operand.hbm [shape: bf16[32,128], index: 3, kind: output, shape index: {1}]
  %4 = xla_tuple %s2, %s3
  %s5 = sld [smem:[#allocation0]]
  $region34: #{tpu_custom_call.1} parent=0
    _
  %s7 = ssub.s32 1, %s5
  %s8 = scalar_select 0, %s7, %s5
  $region1: #{tpu_custom_call.1} parent=0
    #allocation2 [shape = 'u8[8192]{0}', space=vmem, size = 0x2000, scoped, tag = 'input window, operand 0, single buffered']
    #allocation3 [shape = 's32[1]{0}', space=sflag, size = 0x4, scoped, tag = 'scoped memory for tpu_custom_call.1']
    #allocation4 [shape = 's32[1]{0}', space=sflag, size = 0x4, scoped, tag = 'scoped memory for tpu_custom_call.1']
    #allocation5 [shape = 'u8[65536]{0}', space=vmem, size = 0x10000, scoped, tag = 'input window, operand 1, single buffered']
    #allocation6 [shape = 's32[1]{0}', space=sflag, size = 0x4, scoped, tag = 'scoped memory for tpu_custom_call.1']
    #allocation7 [shape = 'u8[16384]{0}', space=vmem, size = 0x4000, scoped, tag = 'output window, operand 0, single buffered']
    #allocation8 [shape = 'u8[8192]{0}', space=vmem, size = 0x2000, scoped, tag = 'output window, operand 1, single buffered']
    #allocation9 [shape = 's32[1]{0}', space=sflag, size = 0x4, scoped, tag = 'scoped memory for tpu_custom_call.1']
    %9 = vsyncpa [#allocation3], 0
    %10 = vsyncpa [#allocation6], 0
    %11 = vsyncpa [#allocation4], 0
    %12 = vsyncpa [#allocation9], 0
    // Predicated region
    $region2: #{tpu_custom_call.1} parent=1 // pred_check
      _
    $region3: #{tpu_custom_call.1} parent=1 // pred_check_branch
      %14 = sbr.rel (0) target = $region5
    $region4: #{tpu_custom_call.1} parent=1 // pred_region
      %s16 = ssub.s32 256, 256
      %17 = vsyncadd [#allocation3], %s16
      %s18 = sshll.u32 [#allocation2], 4
      %s19 = int_to_ptr.vmem [resolvable:$true] %s18
      %24 = dma.hbm_to_vmem [thread:$0]  %s0, 256, %s19, [#allocation3], 64, 64, 4
    $region5: #{tpu_custom_call.1} parent=1 // pred_fallthru
      _
    // Predicated region
    $region6: #{tpu_custom_call.1} parent=1 // pred_check
      _
    $region7: #{tpu_custom_call.1} parent=1 // pred_check_branch
      %26 = sbr.rel (0) target = $region9
    $region8: #{tpu_custom_call.1} parent=1 // pred_region
      %s28 = ssub.s32 2048, 2048
      %29 = vsyncadd [#allocation6], %s28
      %s30 = sshll.u32 [#allocation5], 4
      %s31 = int_to_ptr.vmem [resolvable:$true] %s30
      %36 = dma.hbm_to_vmem [thread:$0]  %s1, 2048, %s31, [#allocation6], 64, 64, 4
    $region9: #{tpu_custom_call.1} parent=1 // pred_fallthru
      _
    // Predicated region
    $region10: #{tpu_custom_call.1} parent=1 // pred_check
      _
    $region11: #{tpu_custom_call.1} parent=1 // pred_check_branch
      %38 = sbr.rel (0) target = $region13
    $region12: #{tpu_custom_call.1} parent=1 // pred_region
      %39 = dma.done [#allocation3], 256
    $region13: #{tpu_custom_call.1} parent=1 // pred_fallthru
      _
    // Predicated region
    $region14: #{tpu_custom_call.1} parent=1 // pred_check
      _
    $region15: #{tpu_custom_call.1} parent=1 // pred_check_branch
      %41 = sbr.rel (0) target = $region17
    $region16: #{tpu_custom_call.1} parent=1 // pred_region
      %42 = dma.done [#allocation6], 2048
    $region17: #{tpu_custom_call.1} parent=1 // pred_fallthru
      _
    %v44 = vld [vmem:[#allocation2] sm:$0xf]
    %v45 = vld [vmem:[#allocation2 + $0x4] sm:$0xf]
    %v46 = vld [vmem:[#allocation2 + $0x8] sm:$0xf]
    %v47 = vld [vmem:[#allocation2 + $0xc] sm:$0xf]
    %v48 = vld [vmem:[#allocation5] sm:$0xf]
    %v49 = vld [vmem:[#allocation5 + $0x4] sm:$0xf]
    %v50 = vld [vmem:[#allocation5 + $0x8] sm:$0xf]
    %v51 = vld [vmem:[#allocation5 + $0xc] sm:$0xf]
    %v52 = vld [vmem:[#allocation5 + $0x10] sm:$0xf]
    %v53 = vld [vmem:[#allocation5 + $0x14] sm:$0xf]
    %v54 = vld [vmem:[#allocation5 + $0x18] sm:$0xf]
    %v55 = vld [vmem:[#allocation5 + $0x1c] sm:$0xf]
    %v56 = vld [vmem:[#allocation5 + $0x20] sm:$0xf]
    %v57 = vld [vmem:[#allocation5 + $0x24] sm:$0xf]
    %v58 = vld [vmem:[#allocation5 + $0x28] sm:$0xf]
    %v59 = vld [vmem:[#allocation5 + $0x2c] sm:$0xf]
    %v60 = vld [vmem:[#allocation5 + $0x30] sm:$0xf]
    %v61 = vld [vmem:[#allocation5 + $0x34] sm:$0xf]
    %v62 = vld [vmem:[#allocation5 + $0x38] sm:$0xf]
    %v63 = vld [vmem:[#allocation5 + $0x3c] sm:$0xf]
    %v68 = vunpack.c.l.b16 %v44
    %v69 = vunpack.c.l.b16 %v45
    %v70 = vunpack.c.l.b16 %v46
    %v71 = vunpack.c.l.b16 %v47
    %v72 = vpack.c.b16 %v69, %v68
    %v73 = vpack.c.b16 %v71, %v70
    %v92 = vunpack.c.l.b16 %v48
    %v93 = vunpack.c.l.b16 %v49
    %v94 = vunpack.c.l.b16 %v50
    %v95 = vunpack.c.l.b16 %v51
    %v96 = vunpack.c.l.b16 %v52
    %v97 = vunpack.c.l.b16 %v53
    %v98 = vunpack.c.l.b16 %v54
    %v99 = vunpack.c.l.b16 %v55
    %v100 = vunpack.c.l.b16 %v56
    %v101 = vunpack.c.l.b16 %v57
    %v102 = vunpack.c.l.b16 %v58
    %v103 = vunpack.c.l.b16 %v59
    %v104 = vunpack.c.l.b16 %v60
    %v105 = vunpack.c.l.b16 %v61
    %v106 = vunpack.c.l.b16 %v62
    %v107 = vunpack.c.l.b16 %v63
    %v108 = vpack.c.b16 %v93, %v92
    %v109 = vpack.c.b16 %v95, %v94
    %v110 = vpack.c.b16 %v97, %v96
    %v111 = vpack.c.b16 %v99, %v98
    %v112 = vpack.c.b16 %v101, %v100
    %v113 = vpack.c.b16 %v103, %v102
    %v114 = vpack.c.b16 %v105, %v104
    %v115 = vpack.c.b16 %v107, %v106
    %124 = vmatprep.subr.bf16.mxu0 0
    %125 = vmatpush1.bf16.msra.mxu0 %v108
    %126 = vmatprep.subr.bf16.mxu0 0
    %127 = vmatpush1.bf16.msra.mxu0 %v109
    %128 = vmatprep.subr.bf16.mxu0 0
    %129 = vmatpush1.bf16.msra.mxu0 %v110
    %130 = vmatprep.subr.bf16.mxu0 0
    %131 = vmatpush1.bf16.msra.mxu0 %v111
    %132 = vmatprep.subr.bf16.mxu0 0
    %133 = vmatpush1.bf16.msra.mxu0 %v112
    %134 = vmatprep.subr.bf16.mxu0 0
    %135 = vmatpush1.bf16.msra.mxu0 %v113
    %136 = vmatprep.subr.bf16.mxu0 0
    %137 = vmatpush1.bf16.msra.mxu0 %v114
    %138 = vmatprep.subr.bf16.mxu0 0
    %139 = vmatpush1.bf16.msra.mxu0 %v115
    %140 = vmatprep.subr.bf16.mxu0 0
    %141 = vmatpush1.bf16.msra.mxu0 0
    %142 = vmatprep.subr.bf16.mxu0 0
    %143 = vmatpush1.bf16.msra.mxu0 0
    %144 = vmatprep.subr.bf16.mxu0 0
    %145 = vmatpush1.bf16.msra.mxu0 0
    %146 = vmatprep.subr.bf16.mxu0 0
    %147 = vmatpush1.bf16.msra.mxu0 0
    %148 = vmatprep.subr.bf16.mxu0 0
    %149 = vmatpush1.bf16.msra.mxu0 0
    %150 = vmatprep.subr.bf16.mxu0 0
    %151 = vmatpush1.bf16.msra.mxu0 0
    %152 = vmatprep.subr.bf16.mxu0 0
    %153 = vmatpush1.bf16.msra.mxu0 0
    %154 = vmatprep.subr.bf16.mxu0 0
    %155 = vmatpush1.bf16.msra.mxu0 0
    %156 = vmatprep.mubr.bf16.mxu0 0
    %157 = vmatmul.mubr.bf16.gmra.mrb[0].mxu0 %v72
    %v158 = vpop.f32.mrb[0].mxu0
    %v159 = vadd.f32 0.0, %v158
    %v160 = vpop.f32.mrb[0].mxu0
    %v161 = vpop.f32.mrb[0].mxu0
    %v162 = vadd.f32 0.0, %v161
    %v163 = vpop.f32.mrb[0].mxu0
    %164 = vmatprep.mubr.bf16.mxu0 0
    %165 = vmatmul.mubr.bf16.gmra.mrb[0].mxu0 %v73
    %v166 = vpop.f32.mrb[0].mxu0
    %v167 = vadd.f32 0.0, %v166
    %v168 = vpop.f32.mrb[0].mxu0
    %v169 = vpop.f32.mrb[0].mxu0
    %v170 = vadd.f32 0.0, %v169
    %v171 = vpop.f32.mrb[0].mxu0
    %172 = vdwg.mxu0
    %s173 = scalar_lea.vmem [#allocation5], 64
    %v174 = vld [vmem:[%s173] sm:$0xf]
    %v175 = vld [vmem:[%s173 + $0x4] sm:$0xf]
    %v176 = vld [vmem:[%s173 + $0x8] sm:$0xf]
    %v177 = vld [vmem:[%s173 + $0xc] sm:$0xf]
    %v178 = vld [vmem:[%s173 + $0x10] sm:$0xf]
    %v179 = vld [vmem:[%s173 + $0x14] sm:$0xf]
    %v180 = vld [vmem:[%s173 + $0x18] sm:$0xf]
    %v181 = vld [vmem:[%s173 + $0x1c] sm:$0xf]
    %v182 = vld [vmem:[%s173 + $0x20] sm:$0xf]
    %v183 = vld [vmem:[%s173 + $0x24] sm:$0xf]
    %v184 = vld [vmem:[%s173 + $0x28] sm:$0xf]
    %v185 = vld [vmem:[%s173 + $0x2c] sm:$0xf]
    %v186 = vld [vmem:[%s173 + $0x30] sm:$0xf]
    %v187 = vld [vmem:[%s173 + $0x34] sm:$0xf]
    %v188 = vld [vmem:[%s173 + $0x38] sm:$0xf]
    %v189 = vld [vmem:[%s173 + $0x3c] sm:$0xf]
    %v206 = vunpack.c.l.b16 %v174
    %v207 = vunpack.c.l.b16 %v175
    %v208 = vunpack.c.l.b16 %v176
    %v209 = vunpack.c.l.b16 %v177
    %v210 = vunpack.c.l.b16 %v178
    %v211 = vunpack.c.l.b16 %v179
    %v212 = vunpack.c.l.b16 %v180
    %v213 = vunpack.c.l.b16 %v181
    %v214 = vunpack.c.l.b16 %v182
    %v215 = vunpack.c.l.b16 %v183
    %v216 = vunpack.c.l.b16 %v184
    %v217 = vunpack.c.l.b16 %v185
    %v218 = vunpack.c.l.b16 %v186
    %v219 = vunpack.c.l.b16 %v187
    %v220 = vunpack.c.l.b16 %v188
    %v221 = vunpack.c.l.b16 %v189
    %v222 = vpack.c.b16 %v207, %v206
    %v223 = vpack.c.b16 %v209, %v208
    %v224 = vpack.c.b16 %v211, %v210
    %v225 = vpack.c.b16 %v213, %v212
    %v226 = vpack.c.b16 %v215, %v214
    %v227 = vpack.c.b16 %v217, %v216
    %v228 = vpack.c.b16 %v219, %v218
    %v229 = vpack.c.b16 %v221, %v220
    %238 = vmatprep.subr.bf16.mxu0 0
    %239 = vmatpush1.bf16.msra.mxu0 %v222
    %240 = vmatprep.subr.bf16.mxu0 0
    %241 = vmatpush1.bf16.msra.mxu0 %v223
    %242 = vmatprep.subr.bf16.mxu0 0
    %243 = vmatpush1.bf16.msra.mxu0 %v224
    %244 = vmatprep.subr.bf16.mxu0 0
    %245 = vmatpush1.bf16.msra.mxu0 %v225
    %246 = vmatprep.subr.bf16.mxu0 0
    %247 = vmatpush1.bf16.msra.mxu0 %v226
    %248 = vmatprep.subr.bf16.mxu0 0
    %249 = vmatpush1.bf16.msra.mxu0 %v227
    %250 = vmatprep.subr.bf16.mxu0 0
    %251 = vmatpush1.bf16.msra.mxu0 %v228
    %252 = vmatprep.subr.bf16.mxu0 0
    %253 = vmatpush1.bf16.msra.mxu0 %v229
    %254 = vmatprep.subr.bf16.mxu0 0
    %255 = vmatpush1.bf16.msra.mxu0 0
    %256 = vmatprep.subr.bf16.mxu0 0
    %257 = vmatpush1.bf16.msra.mxu0 0
    %258 = vmatprep.subr.bf16.mxu0 0
    %259 = vmatpush1.bf16.msra.mxu0 0
    %260 = vmatprep.subr.bf16.mxu0 0
    %261 = vmatpush1.bf16.msra.mxu0 0
    %262 = vmatprep.subr.bf16.mxu0 0
    %263 = vmatpush1.bf16.msra.mxu0 0
    %264 = vmatprep.subr.bf16.mxu0 0
    %265 = vmatpush1.bf16.msra.mxu0 0
    %266 = vmatprep.subr.bf16.mxu0 0
    %267 = vmatpush1.bf16.msra.mxu0 0
    %268 = vmatprep.subr.bf16.mxu0 0
    %269 = vmatpush1.bf16.msra.mxu0 0
    %270 = vmatprep.mubr.bf16.mxu0 0
    %271 = vmatmul.mubr.bf16.gmra.mrb[0].mxu0 %v72
    %v272 = vpop.f32.mrb[0].mxu0
    %v273 = vadd.f32 0.0, %v272
    %v274 = vpop.f32.mrb[0].mxu0
    %v275 = vpop.f32.mrb[0].mxu0
    %v276 = vadd.f32 0.0, %v275
    %v277 = vpop.f32.mrb[0].mxu0
    %278 = vmatprep.mubr.bf16.mxu0 0
    %279 = vmatmul.mubr.bf16.gmra.mrb[0].mxu0 %v73
    %v280 = vpop.f32.mrb[0].mxu0
    %v281 = vadd.f32 0.0, %v280
    %v282 = vpop.f32.mrb[0].mxu0
    %v283 = vpop.f32.mrb[0].mxu0
    %v284 = vadd.f32 0.0, %v283
    %v285 = vpop.f32.mrb[0].mxu0
    %286 = vdwg.mxu0
    %v287 = vsub.f32 0.0, %v273
    %v288 = vsub.f32 0.0, %v276
    %v289 = vsub.f32 0.0, %v281
    %v290 = vsub.f32 0.0, %v284
    %v291 = vmul.f32 %v159, %v159
    %v292 = vmul.f32 %v162, %v162
    %v293 = vmul.f32 %v167, %v167
    %v294 = vmul.f32 %v170, %v170
    %v295 = vmul.f32 %v287, %v287
    %v296 = vmul.f32 %v288, %v288
    %v297 = vmul.f32 %v289, %v289
    %v298 = vmul.f32 %v290, %v290
    %v299 = vadd.f32 %v291, %v295
    %v300 = vadd.f32 %v292, %v296
    %v301 = vadd.f32 %v293, %v297
    %v302 = vadd.f32 %v294, %v298
    %v303 = vrsqrt.pop %v299
    %v304 = vmul.f32 %v299, %v303
    %vm305 = vcmp.eq.f32.partialorder %v299, inf
    %v306 = vsel %vm305, %v299, %v304
    %vm307 = vcmp.eq.f32.partialorder %v299, 0.0
    %v308 = vand.u32 %v299, 2147483648
    %v309 = vsel %vm307, %v308, %v306
    %v310 = vrsqrt.pop %v300
    %v311 = vmul.f32 %v300, %v310
    %vm312 = vcmp.eq.f32.partialorder %v300, inf
    %v313 = vsel %vm312, %v300, %v311
    %vm314 = vcmp.eq.f32.partialorder %v300, 0.0
    %v315 = vand.u32 %v300, 2147483648
    %v316 = vsel %vm314, %v315, %v313
    %v317 = vrsqrt.pop %v301
    %v318 = vmul.f32 %v301, %v317
    %vm319 = vcmp.eq.f32.partialorder %v301, inf
    %v320 = vsel %vm319, %v301, %v318
    %vm321 = vcmp.eq.f32.partialorder %v301, 0.0
    %v322 = vand.u32 %v301, 2147483648
    %v323 = vsel %vm321, %v322, %v320
    %v324 = vrsqrt.pop %v302
    %v325 = vmul.f32 %v302, %v324
    %vm326 = vcmp.eq.f32.partialorder %v302, inf
    %v327 = vsel %vm326, %v302, %v325
    %vm328 = vcmp.eq.f32.partialorder %v302, 0.0
    %v329 = vand.u32 %v302, 2147483648
    %v330 = vsel %vm328, %v329, %v327
    %331 = vst [vmem:[#allocation7] sm:$0xff] %v309
    %332 = vst [vmem:[#allocation7 + $0x8] sm:$0xff] %v316
    %333 = vst [vmem:[#allocation7 + $0x10] sm:$0xff] %v323
    %334 = vst [vmem:[#allocation7 + $0x18] sm:$0xff] %v330
    %v335 = vand.u32 2147483647, %v159
    %v336 = vand.u32 2147483647, %v162
    %v337 = vand.u32 2147483647, %v167
    %v338 = vand.u32 2147483647, %v170
    %v339 = vand.u32 2147483647, %v287
    %v340 = vand.u32 2147483647, %v288
    %v341 = vand.u32 2147483647, %v289
    %v342 = vand.u32 2147483647, %v290
    %v343 = vmax.f32 %v335, %v339
    %v344 = vmax.f32 %v336, %v340
    %v345 = vmax.f32 %v337, %v341
    %v346 = vmax.f32 %v338, %v342
    %v347 = vmin.f32 %v335, %v339
    %v348 = vmin.f32 %v336, %v340
    %v349 = vmin.f32 %v337, %v341
    %v350 = vmin.f32 %v338, %v342
    %v351 = vmax.f32 %v343, 1e-30
    %v352 = vmax.f32 %v344, 1e-30
    %v353 = vmax.f32 %v345, 1e-30
    %v354 = vmax.f32 %v346, 1e-30
    %v355 = vrcp.pop %v351
    %v356 = vrcp.pop %v352
    %v357 = vrcp.pop %v353
    %v358 = vrcp.pop %v354
    %v359 = vmul.f32 %v347, %v355
    %v360 = vmul.f32 %v348, %v356
    %v361 = vmul.f32 %v349, %v357
    %v362 = vmul.f32 %v350, %v358
    %v363 = vmul.f32 %v359, %v359
    %v364 = vmul.f32 %v360, %v360
    %v365 = vmul.f32 %v361, %v361
    %v366 = vmul.f32 %v362, %v362
    %v367 = vmul.f32 %v363, 0.0208351
    %v368 = vmul.f32 %v364, 0.0208351
    %v369 = vmul.f32 %v365, 0.0208351
    %v370 = vmul.f32 %v366, 0.0208351
    %v371 = vadd.f32 %v367, -0.085133
    %v372 = vadd.f32 %v368, -0.085133
    %v373 = vadd.f32 %v369, -0.085133
    %v374 = vadd.f32 %v370, -0.085133
    %v375 = vmul.f32 %v363, %v371
    %v376 = vmul.f32 %v364, %v372
    %v377 = vmul.f32 %v365, %v373
    %v378 = vmul.f32 %v366, %v374
    %v379 = vadd.f32 %v375, 0.180141
    %v380 = vadd.f32 %v376, 0.180141
    %v381 = vadd.f32 %v377, 0.180141
    %v382 = vadd.f32 %v378, 0.180141
    %v383 = vmul.f32 %v363, %v379
    %v384 = vmul.f32 %v364, %v380
    %v385 = vmul.f32 %v365, %v381
    %v386 = vmul.f32 %v366, %v382
    %v387 = vadd.f32 %v383, -0.3302995
    %v388 = vadd.f32 %v384, -0.3302995
    %v389 = vadd.f32 %v385, -0.3302995
    %v390 = vadd.f32 %v386, -0.3302995
    %v391 = vmul.f32 %v363, %v387
    %v392 = vmul.f32 %v364, %v388
    %v393 = vmul.f32 %v365, %v389
    %v394 = vmul.f32 %v366, %v390
    %v395 = vadd.f32 %v391, 0.999866
    %v396 = vadd.f32 %v392, 0.999866
    %v397 = vadd.f32 %v393, 0.999866
    %v398 = vadd.f32 %v394, 0.999866
    %v399 = vmul.f32 %v359, %v395
    %v400 = vmul.f32 %v360, %v396
    %v401 = vmul.f32 %v361, %v397
    %v402 = vmul.f32 %v362, %v398
    %vm403 = vcmp.gt.f32.partialorder %v339, %v335
    %vm404 = vcmp.gt.f32.partialorder %v340, %v336
    %vm405 = vcmp.gt.f32.partialorder %v341, %v337
    %vm406 = vcmp.gt.f32.partialorder %v342, %v338
    %v407 = vsub.f32 1.5707964, %v399
    %v408 = vsub.f32 1.5707964, %v400
    %v409 = vsub.f32 1.5707964, %v401
    %v410 = vsub.f32 1.5707964, %v402
    %v411 = vsel %vm403, %v407, %v399
    %v412 = vsel %vm404, %v408, %v400
    %v413 = vsel %vm405, %v409, %v401
    %v414 = vsel %vm406, %v410, %v402
    %vm415 = vcmp.lt.f32.partialorder %v159, 0.0
    %vm416 = vcmp.lt.f32.partialorder %v162, 0.0
    %vm417 = vcmp.lt.f32.partialorder %v167, 0.0
    %vm418 = vcmp.lt.f32.partialorder %v170, 0.0
    %v419 = vsub.f32 3.1415927, %v411
    %v420 = vsub.f32 3.1415927, %v412
    %v421 = vsub.f32 3.1415927, %v413
    %v422 = vsub.f32 3.1415927, %v414
    %v423 = vsel %vm415, %v419, %v411
    %v424 = vsel %vm416, %v420, %v412
    %v425 = vsel %vm417, %v421, %v413
    %v426 = vsel %vm418, %v422, %v414
    %vm427 = vcmp.lt.f32.partialorder %v287, 0.0
    %vm428 = vcmp.lt.f32.partialorder %v288, 0.0
    %vm429 = vcmp.lt.f32.partialorder %v289, 0.0
    %vm430 = vcmp.lt.f32.partialorder %v290, 0.0
    %v431 = vsub.f32 0.0, %v423
    %v432 = vsub.f32 0.0, %v424
    %v433 = vsub.f32 0.0, %v425
    %v434 = vsub.f32 0.0, %v426
    %v435 = vsel %vm427, %v431, %v423
    %v436 = vsel %vm428, %v432, %v424
    %v437 = vsel %vm429, %v433, %v425
    %v438 = vsel %vm430, %v434, %v426
    %v439 = vpack.c.bf16 %v436, %v435
    %v440 = vpack.c.bf16 %v438, %v437
    %v443 = vunpack.c.l.b16 %v439
    %v444 = vunpack.c.h.b16 %v439
    %v445 = vunpack.c.l.b16 %v440
    %v446 = vunpack.c.h.b16 %v440
    %v447 = vpack.c.b16 %v443, %v443
    %v448 = vpack.c.b16 %v444, %v444
    %v449 = vpack.c.b16 %v445, %v445
    %v450 = vpack.c.b16 %v446, %v446
    %455 = vst [vmem:[#allocation8] sm:$0xf] %v447
    %456 = vst [vmem:[#allocation8 + $0x4] sm:$0xf] %v448
    %457 = vst [vmem:[#allocation8 + $0x8] sm:$0xf] %v449
    %458 = vst [vmem:[#allocation8 + $0xc] sm:$0xf] %v450
    // Predicated region
    $region18: #{tpu_custom_call.1} parent=1 // pred_check
      _
    $region19: #{tpu_custom_call.1} parent=1 // pred_check_branch
      %460 = sbr.rel (0) target = $region21
    $region20: #{tpu_custom_call.1} parent=1 // pred_region
      %s462 = ssub.s32 512, 512
      %463 = vsyncadd [#allocation4], %s462
      %s464 = sshll.u32 [#allocation7], 4
      %s465 = int_to_ptr.vmem [resolvable:$true] %s464
      %470 = dma.vmem_to_hbm [thread:$0]  %s465, 512, %s2, [#allocation4], 128, 128, 8
    $region21: #{tpu_custom_call.1} parent=1 // pred_fallthru
      _
    // Predicated region
    $region22: #{tpu_custom_call.1} parent=1 // pred_check
      _
    $region23: #{tpu_custom_call.1} parent=1 // pred_check_branch
      %472 = sbr.rel (0) target = $region25
    $region24: #{tpu_custom_call.1} parent=1 // pred_region
      %s474 = ssub.s32 256, 256
      %475 = vsyncadd [#allocation9], %s474
      %s476 = sshll.u32 [#allocation8], 4
      %s477 = int_to_ptr.vmem [resolvable:$true] %s476
      %482 = dma.vmem_to_hbm [thread:$0]  %s477, 256, %s3, [#allocation9], 64, 64, 4
    $region25: #{tpu_custom_call.1} parent=1 // pred_fallthru
      _
    // Predicated region
    $region26: #{tpu_custom_call.1} parent=1 // pred_check
      _
    $region27: #{tpu_custom_call.1} parent=1 // pred_check_branch
      %484 = sbr.rel (0) target = $region29
    $region28: #{tpu_custom_call.1} parent=1 // pred_region
      %485 = dma.done [#allocation4], 512
    $region29: #{tpu_custom_call.1} parent=1 // pred_fallthru
      _
    // Predicated region
    $region30: #{tpu_custom_call.1} parent=1 // pred_check
      _
    $region31: #{tpu_custom_call.1} parent=1 // pred_check_branch
      %487 = sbr.rel (0) target = $region33
    $region32: #{tpu_custom_call.1} parent=1 // pred_region
      %488 = dma.done [#allocation9], 256
    $region33: #{tpu_custom_call.1} parent=1 // pred_fallthru
      _
    %489 = vsyncpa [#allocation3], 1
    %490 = vsyncpa [#allocation6], 1
    %491 = vsyncpa [#allocation4], 1
    %492 = vsyncpa [#allocation9], 1

</llo_original>
